<compile_context>
chip_gen: v6e
topology: v6e:2x2x1
jax: 0.10.0
libtpu: 0.0.40
codegen_flags: <defaults>
</compile_context>

<pallas_src>
import jax
import jax.numpy as jnp
from jax.experimental import pallas as pl
from jax.experimental.pallas import tpu as pltpu

LANES = 128      # f32 vreg lane width
SUBLANES = 8     # f32 vreg sublane count


def _sqdiff_partial_kernel(a_ref, p_ref, out_ref):
    """Accumulate sum of (a - p)**2 into a vreg-shaped (8, 128) partial.

    Grid = (splits [parallel], steps [arbitrary/reduction]). The output block
    index is constant along the reduction axis, so out_ref stays resident in
    VMEM and serves as the accumulator.
    """
    k = pl.program_id(1)

    @pl.when(k == 0)
    def _():
        out_ref[...] = jnp.zeros_like(out_ref)

    a = a_ref[...].astype(jnp.float32)
    p = p_ref[...].astype(jnp.float32)
    d = a - p
    sq = d * d
    # (tr, 128) -> (tr//8, 8, 128) is a layout-preserving vreg stacking, so
    # summing over axis 0 is pure vreg-wise VPU addition (no XLU in the hot
    # loop).
    out_ref[...] += jnp.sum(sq.reshape(-1, SUBLANES, LANES), axis=0)


def _round_up(x, m):
    return ((x + m - 1) // m) * m


def _round_down(x, m):
    return (x // m) * m


def _hw_config():
    """Return (num_cores, target_block_bytes, vmem_limit_bytes or None)."""
    kind = ""
    try:
        kind = jax.devices()[0].device_kind.lower()
    except Exception:
        pass
    if "v7" in kind:
        # 2 TensorCores; 64 MiB physical VMEM -> 4 MiB blocks (16 MiB
        # double-buffered for both inputs) leave plenty of headroom.
        return 2, 4 << 20, None
    if "v6" in kind:
        # Single TC, 32 MiB default scoped VMEM.
        return 1, 4 << 20, None
    if "v5 lite" in kind or "v5e" in kind or "v5litepod" in kind:
        # Single TC, 16 MiB default scoped VMEM (128 MiB physical): raise the
        # limit so 4 MiB blocks still double-buffer comfortably.
        return 1, 4 << 20, 64 << 20
    # Unknown / older generation: conservative.
    return 1, 2 << 20, None


def _compiler_params(vmem_limit):
    kwargs = dict(dimension_semantics=("parallel", "arbitrary"))
    if vmem_limit is not None:
        kwargs["vmem_limit_bytes"] = int(vmem_limit)
    return pltpu.CompilerParams(**kwargs)


def _partial_sums_2d(a2, p2, *, tr, ncol, splits, steps, vmem_limit):
    """Partial sums over the first splits*steps (tr, 128) blocks of (B, D)."""

    def in_map(c, k):
        b = c * steps + k
        return (b // ncol, b % ncol)

    return pl.pallas_call(
        _sqdiff_partial_kernel,
        out_shape=jax.ShapeDtypeStruct((splits, SUBLANES, LANES), jnp.float32),
        grid_spec=pltpu.PrefetchScalarGridSpec(
            num_scalar_prefetch=0,
            grid=(splits, steps),
            in_specs=[
                pl.BlockSpec((tr, LANES), in_map),
                pl.BlockSpec((tr, LANES), in_map),
            ],
            out_specs=pl.BlockSpec((None, SUBLANES, LANES), lambda c, k: (c, 0, 0)),
        ),
        compiler_params=_compiler_params(vmem_limit),
    )(a2, p2)


def _partial_sums_3d(a3, p3, *, tr, splits, steps, vmem_limit):
    """Partial sums over a lane-dense (splits, R, 128) padded view."""
    return pl.pallas_call(
        _sqdiff_partial_kernel,
        out_shape=jax.ShapeDtypeStruct((splits, SUBLANES, LANES), jnp.float32),
        grid_spec=pltpu.PrefetchScalarGridSpec(
            num_scalar_prefetch=0,
            grid=(splits, steps),
            in_specs=[
                pl.BlockSpec((None, tr, LANES), lambda c, k: (c, k, 0)),
                pl.BlockSpec((None, tr, LANES), lambda c, k: (c, k, 0)),
            ],
            out_specs=pl.BlockSpec((None, SUBLANES, LANES), lambda c, k: (c, 0, 0)),
        ),
        compiler_params=_compiler_params(vmem_limit),
    )(a3, p3)


def positive_loss(anchor, positive, margin=0.0, *, tile_rows=None, num_splits=None):
    """Pallas implementation of positive_loss.forward. Returns a scalar f32.

    relu(1000.0 * sum((anchor - positive)**2) + margin)
    """
    assert anchor.shape == positive.shape, (anchor.shape, positive.shape)
    total = int(anchor.size)

    num_cores, target_block_bytes, vmem_limit = _hw_config()
    want_splits = num_cores if num_splits is None else max(1, int(num_splits))

    itemsize = int(jnp.dtype(anchor.dtype).itemsize)
    # Native packed-sublane granularity: f32 -> 8, bf16 -> 16, int8/fp8 -> 32.
    mult = max(SUBLANES, 32 // max(1, itemsize))
    tr_target = max(mult, _round_down(target_block_bytes // (LANES * itemsize), mult))
    if tile_rows is not None:
        tr_target = max(mult, _round_up(int(tile_rows), mult))

    extra_sq = jnp.float32(0.0)

    fast_path = (anchor.ndim == 2
                 and anchor.shape[1] % LANES == 0
                 and anchor.shape[0] >= mult)

    if fast_path:
        # ---- Fast path: tile the original (B, D) arrays directly. ----
        B, D = anchor.shape
        ncol = D // LANES
        # Split B into nearly-equal row tiles close to the bandwidth target,
        # each a multiple of the dtype's sublane granularity.
        n_chunks = max(1, pl.cdiv(B, tr_target))
        tr = max(mult, _round_down(pl.cdiv(B, n_chunks), mult))
        tr = min(tr, tr_target)
        nrow = B // tr
        b_main = nrow * tr
        total_blocks = nrow * ncol

        splits = want_splits if (want_splits > 1
                                 and total_blocks % want_splits == 0
                                 and total_blocks >= 2 * want_splits) else 1
        steps = total_blocks // splits

        partials = _partial_sums_2d(anchor, positive, tr=tr, ncol=ncol,
                                    splits=splits, steps=steps,
                                    vmem_limit=vmem_limit)
        if b_main < B:
            # Small ragged row tail (< tr rows): plain-JAX epilogue instead of
            # padding/relayouting the whole input.
            at = anchor[b_main:].astype(jnp.float32)
            pt = positive[b_main:].astype(jnp.float32)
            extra_sq = jnp.sum((at - pt) ** 2)
    else:
        # ---- Fallback: flatten + zero-pad to a lane-dense view. ----
        rows = max(1, pl.cdiv(total, LANES))
        splits = want_splits if (want_splits > 1
                                 and rows >= want_splits * 2 * mult) else 1
        rows_per_split_min = pl.cdiv(rows, splits)
        tr = min(tr_target, _round_up(rows_per_split_min, mult))
        tr = max(mult, _round_up(tr, mult))
        rows_per_split = _round_up(rows_per_split_min, tr)
        padded_len = splits * rows_per_split * LANES

        a_flat = anchor.reshape(-1)
        p_flat = positive.reshape(-1)
        pad = padded_len - total
        if pad:
            # Padded zeros contribute (0-0)**2 == 0 to the sum.
            a_flat = jnp.pad(a_flat, (0, pad))
            p_flat = jnp.pad(p_flat, (0, pad))
        a3 = a_flat.reshape(splits, rows_per_split, LANES)
        p3 = p_flat.reshape(splits, rows_per_split, LANES)
        steps = rows_per_split // tr

        partials = _partial_sums_3d(a3, p3, tr=tr, splits=splits,
                                    steps=steps, vmem_limit=vmem_limit)

    # Tiny epilogue in plain JAX (keeps `margin` traced -> no recompiles).
    total_sq = jnp.sum(partials) + extra_sq
    loss = jnp.maximum(total_sq * 1000.0 + margin, 0.0)
    return loss  # losses.mean() of a scalar is the scalar itself


def _ref_loss(anchor, positive, margin):
    return jnp.maximum(
        jnp.sum((anchor.astype(jnp.float32) - positive.astype(jnp.float32)) ** 2)
        * 1000.0 + margin, 0.0)


if __name__ == "__main__":
    key = jax.random.PRNGKey(0)
    k1, k2, k3, k4 = jax.random.split(key, 4)
    margin = 0.0

    # 1) Small, ragged feature dim (exercises the flatten/pad fallback path).
    B, D = 8, 32
    anchor = jax.random.normal(k1, (B, D), dtype=jnp.float32)
    positive = jax.random.normal(k2, (B, D), dtype=jnp.float32)
    loss = jax.block_until_ready(positive_loss(anchor, positive, margin=margin))
    ref = _ref_loss(anchor, positive, margin)
    assert jnp.allclose(loss, ref, rtol=1e-5, atol=1e-2), (loss, ref)

    # 2) Lane-aligned feature dim (exercises the no-relayout fast path).
    B2, D2 = 16, 128
    anchor2 = jax.random.normal(k3, (B2, D2), dtype=jnp.float32)
    positive2 = jax.random.normal(k4, (B2, D2), dtype=jnp.float32)
    loss2 = jax.block_until_ready(positive_loss(anchor2, positive2, margin=margin))
    ref2 = _ref_loss(anchor2, positive2, margin)
    assert jnp.allclose(loss2, ref2, rtol=1e-5, atol=1e-2), (loss2, ref2)

    print("KERNEL_OK")
</pallas_src>

<mosaic_0001>
module attributes {stable_mosaic.version = 11 : i64} {
  func.func @_sqdiff_partial_kernel(%arg0: i32, %arg1: i32, %arg2: memref<1x8x128xf32, #tpu.memory_space<vmem>>, %arg3: memref<1x8x128xf32, #tpu.memory_space<vmem>>, %arg4: memref<1x8x128xf32, #tpu.memory_space<vmem>>) attributes {dimension_semantics = [#tpu.dimension_semantics<parallel>, #tpu.dimension_semantics<arbitrary>], iteration_bounds = array<i64: 1, 1>, scalar_prefetch = 0 : i64, scratch_operands = 0 : i64, tpu.core_type = #tpu.core_type<tc>, window_params = [{transform_indices = @transform_0, window_bounds = array<i64: 1, 8, 128>}, {transform_indices = @transform_1, window_bounds = array<i64: 1, 8, 128>}, {transform_indices = @transform_2, window_bounds = array<i64: 1, 8, 128>}]} {
    %c0_i32 = arith.constant 0 : i32
    %0 = arith.cmpi eq, %arg1, %c0_i32 : i32
    %1 = arith.extui %0 : i1 to i32
    %c0_i32_0 = arith.constant 0 : i32
    %2 = arith.cmpi ne, %1, %c0_i32_0 : i32
    scf.if %2 {
      %cst_12 = arith.constant 0.000000e+00 : f32
      %17 = vector.broadcast %cst_12 : f32 to vector<8x128xf32>
      %c0_13 = arith.constant 0 : index
      %c0_14 = arith.constant 0 : index
      %c0_15 = arith.constant 0 : index
      %18 = vector.load %arg4[%c0_13, %c0_14, %c0_15] : memref<1x8x128xf32, #tpu.memory_space<vmem>>, vector<1x8x128xf32>
      %19 = vector.shape_cast %18 : vector<1x8x128xf32> to vector<8x128xf32>
      %20 = vector.shape_cast %17 : vector<8x128xf32> to vector<1x8x128xf32>
      tpu.vector_store %arg4[%c0_13, %c0_14, %c0_15], %20 {strides = array<i32>} : memref<1x8x128xf32, #tpu.memory_space<vmem>>, vector<1x8x128xf32>,
    } else {
    }
    %c0 = arith.constant 0 : index
    %c0_1 = arith.constant 0 : index
    %c0_2 = arith.constant 0 : index
    %3 = vector.load %arg2[%c0, %c0_1, %c0_2] : memref<1x8x128xf32, #tpu.memory_space<vmem>>, vector<1x8x128xf32>
    %4 = vector.shape_cast %3 : vector<1x8x128xf32> to vector<8x128xf32>
    %c0_3 = arith.constant 0 : index
    %c0_4 = arith.constant 0 : index
    %c0_5 = arith.constant 0 : index
    %5 = vector.load %arg3[%c0_3, %c0_4, %c0_5] : memref<1x8x128xf32, #tpu.memory_space<vmem>>, vector<1x8x128xf32>
    %6 = vector.shape_cast %5 : vector<1x8x128xf32> to vector<8x128xf32>
    %7 = arith.subf %4, %6 : vector<8x128xf32>
    %8 = arith.mulf %7, %7 : vector<8x128xf32>
    %c0_6 = arith.constant 0 : index
    %c0_7 = arith.constant 0 : index
    %c0_8 = arith.constant 0 : index
    %9 = vector.load %arg4[%c0_6, %c0_7, %c0_8] : memref<1x8x128xf32, #tpu.memory_space<vmem>>, vector<1x8x128xf32>
    %10 = vector.shape_cast %9 : vector<1x8x128xf32> to vector<8x128xf32>
    %11 = vector.shape_cast %8 : vector<8x128xf32> to vector<1x8x128xf32>
    %cst = arith.constant dense<0.000000e+00> : vector<8x128xf32>
    %12 = vector.multi_reduction <add>, %11, %cst [0] : vector<1x8x128xf32> to vector<8x128xf32>
    %13 = arith.addf %10, %12 : vector<8x128xf32>
    %c0_9 = arith.constant 0 : index
    %c0_10 = arith.constant 0 : index
    %c0_11 = arith.constant 0 : index
    %14 = vector.load %arg4[%c0_9, %c0_10, %c0_11] : memref<1x8x128xf32, #tpu.memory_space<vmem>>, vector<1x8x128xf32>
    %15 = vector.shape_cast %14 : vector<1x8x128xf32> to vector<8x128xf32>
    %16 = vector.shape_cast %13 : vector<8x128xf32> to vector<1x8x128xf32>
    tpu.vector_store %arg4[%c0_9, %c0_10, %c0_11], %16 {strides = array<i32>} : memref<1x8x128xf32, #tpu.memory_space<vmem>>, vector<1x8x128xf32>,
    return
  }
  func.func @transform_0(%arg0: i32, %arg1: i32) -> (i32, i32, i32) {
    %c0_i32 = arith.constant 0 : i32
    %c0_i32_0 = arith.constant 0 : i32
    return %arg0, %arg1, %c0_i32 : i32, i32, i32
  }
  func.func @transform_1(%arg0: i32, %arg1: i32) -> (i32, i32, i32) {
    %c0_i32 = arith.constant 0 : i32
    %c0_i32_0 = arith.constant 0 : i32
    return %arg0, %arg1, %c0_i32 : i32, i32, i32
  }
  func.func @transform_2(%arg0: i32, %arg1: i32) -> (i32, i32, i32) {
    %c0_i32 = arith.constant 0 : i32
    %c0_i32_0 = arith.constant 0 : i32
    %c0_i32_1 = arith.constant 0 : i32
    return %arg0, %c0_i32, %c0_i32_0 : i32, i32, i32
  }
}

</mosaic_0001>

<llo_original>
// kernel: tpu_custom_call.1
$region0: #{tpu_custom_call.1}
  #allocation0 [shape = 'u32[]', space=smem, size = 0x4, offset = 0x4, fixed_abs, tag = 'smem constant byte address 0x4 - core index']
  #allocation1 [shape = 'u32[144,128]{1,0:T(1,128)}', space=vmem, size = 0x12000, scoped, tag = 'internal scratch']
  %s0 = inlined_call_operand.hbm [shape: f32[1,8,128], index: 0, kind: input, shape index: {}]
  %s1 = inlined_call_operand.hbm [shape: f32[1,8,128], index: 1, kind: input, shape index: {}]
  %s2 = inlined_call_operand.hbm [shape: f32[1,8,128], index: 2, kind: output, shape index: {}]
  %s3 = sld [smem:[#allocation0]]
  $region30: #{tpu_custom_call.1} parent=0
    _
  %s5 = ssub.s32 1, %s3
  %s6 = scalar_select 0, %s5, %s3
  $region1: #{tpu_custom_call.1} parent=0
    #allocation2 [shape = 'u8[4096]{0}', space=vmem, size = 0x1000, scoped, tag = 'input window, operand 0, single buffered']
    #allocation3 [shape = 's32[1]{0}', space=sflag, size = 0x4, scoped, tag = 'scoped memory for tpu_custom_call.1']
    #allocation4 [shape = 's32[1]{0}', space=sflag, size = 0x4, scoped, tag = 'scoped memory for tpu_custom_call.1']
    #allocation5 [shape = 'u8[4096]{0}', space=vmem, size = 0x1000, scoped, tag = 'input window, operand 1, single buffered']
    #allocation6 [shape = 's32[1]{0}', space=sflag, size = 0x4, scoped, tag = 'scoped memory for tpu_custom_call.1']
    #allocation7 [shape = 'u8[4096]{0}', space=vmem, size = 0x1000, scoped, tag = 'output window, operand 0, single buffered']
    %7 = vsyncpa [#allocation3], 0
    %8 = vsyncpa [#allocation6], 0
    %9 = vsyncpa [#allocation4], 0
    // Predicated region
    $region2: #{tpu_custom_call.1} parent=1 // pred_check
      _
    $region3: #{tpu_custom_call.1} parent=1 // pred_check_branch
      %11 = sbr.rel (0) target = $region5
    $region4: #{tpu_custom_call.1} parent=1 // pred_region
      %s13 = ssub.s32 128, 128
      %14 = vsyncadd [#allocation3], %s13
      %s16 = sshll.u32 [#allocation2], 4
      %s17 = int_to_ptr.vmem [resolvable:$true] %s16
      %19 = dma.hbm_to_vmem [thread:$0]  %s0, 128, %s17, [#allocation3]
    $region5: #{tpu_custom_call.1} parent=1 // pred_fallthru
      _
    // Predicated region
    $region6: #{tpu_custom_call.1} parent=1 // pred_check
      _
    $region7: #{tpu_custom_call.1} parent=1 // pred_check_branch
      %21 = sbr.rel (0) target = $region9
    $region8: #{tpu_custom_call.1} parent=1 // pred_region
      %s23 = ssub.s32 128, 128
      %24 = vsyncadd [#allocation6], %s23
      %s26 = sshll.u32 [#allocation5], 4
      %s27 = int_to_ptr.vmem [resolvable:$true] %s26
      %29 = dma.hbm_to_vmem [thread:$0]  %s1, 128, %s27, [#allocation6]
    $region9: #{tpu_custom_call.1} parent=1 // pred_fallthru
      _
    // Predicated region
    $region10: #{tpu_custom_call.1} parent=1 // pred_check
      _
    $region11: #{tpu_custom_call.1} parent=1 // pred_check_branch
      %31 = sbr.rel (0) target = $region13
    $region12: #{tpu_custom_call.1} parent=1 // pred_region
      %32 = dma.done [#allocation3], 128
    $region13: #{tpu_custom_call.1} parent=1 // pred_fallthru
      _
    // Predicated region
    $region14: #{tpu_custom_call.1} parent=1 // pred_check
      _
    $region15: #{tpu_custom_call.1} parent=1 // pred_check_branch
      %34 = sbr.rel (0) target = $region17
    $region16: #{tpu_custom_call.1} parent=1 // pred_region
      %35 = dma.done [#allocation6], 128
    $region17: #{tpu_custom_call.1} parent=1 // pred_fallthru
      _
    %p36 = scmp.eq.s32.totalorder 0, 0
    // Predicated region
    $region18: #{tpu_custom_call.1} parent=1 // pred_check
      %p37 = pneg %p36
    $region19: #{tpu_custom_call.1} parent=1 // pred_check_branch
      %39 = sbr.rel (%p37) target = $region21
    $region20: #{tpu_custom_call.1} parent=1 // pred_region
      %40 = vst [vmem:[#allocation7] sm:$0xff] 0.0
    $region21: #{tpu_custom_call.1} parent=1 // pred_fallthru
      _
    %v41 = vld [vmem:[#allocation2] sm:$0xff]
    %v42 = vld [vmem:[#allocation5] sm:$0xff]
    %v43 = vsub.f32 %v41, %v42
    %v44 = vmul.f32 %v43, %v43
    %v45 = vld [vmem:[#allocation7] sm:$0xff]
    %v46 = vadd.f32 %v44, 0.0
    %v47 = vadd.f32 %v45, %v46
    %48 = vst [vmem:[#allocation7] sm:$0xff] %v47
    // Predicated region
    $region22: #{tpu_custom_call.1} parent=1 // pred_check
      _
    $region23: #{tpu_custom_call.1} parent=1 // pred_check_branch
      %50 = sbr.rel (0) target = $region25
    $region24: #{tpu_custom_call.1} parent=1 // pred_region
      %s52 = ssub.s32 128, 128
      %53 = vsyncadd [#allocation4], %s52
      %s55 = sshll.u32 [#allocation7], 4
      %s56 = int_to_ptr.vmem [resolvable:$true] %s55
      %58 = dma.vmem_to_hbm [thread:$0]  %s56, 128, %s2, [#allocation4]
    $region25: #{tpu_custom_call.1} parent=1 // pred_fallthru
      _
    // Predicated region
    $region26: #{tpu_custom_call.1} parent=1 // pred_check
      _
    $region27: #{tpu_custom_call.1} parent=1 // pred_check_branch
      %60 = sbr.rel (0) target = $region29
    $region28: #{tpu_custom_call.1} parent=1 // pred_region
      %61 = dma.done [#allocation4], 128
    $region29: #{tpu_custom_call.1} parent=1 // pred_fallthru
      _
    %62 = vsyncpa [#allocation3], 1
    %63 = vsyncpa [#allocation6], 1
    %64 = vsyncpa [#allocation4], 1

</llo_original>
